<compile_context>
chip_gen: v7x
topology: tpu7x:2x2x1
jax: 0.10.0
libtpu: 0.0.40
codegen_flags: <defaults>
</compile_context>

<pallas_src>
import math

import jax
import jax.numpy as jnp
from jax import lax
from jax.experimental import pallas as pl
from jax.experimental.pallas import tpu as pltpu


# ----------------------------------------------------------------------------
# tiling helpers
# ----------------------------------------------------------------------------
_LANE = 128
_SUBLANE = 8


def _round_up(x, m):
    return ((x + m - 1) // m) * m


def _vmem_budget_bytes():
    """Generation-aware per-kernel VMEM budget (~0.7x physical capacity, capped)."""
    cap = 64 << 20  # conservative fallback = v7x physical VMEM per TensorCore
    try:
        info = pltpu.get_tpu_info()
        cap = int(getattr(info, "vmem_capacity_bytes", cap))
    except Exception:
        pass
    budget = int(0.70 * cap)
    return max(min(budget, 100 << 20), 24 << 20)


def _largest_fitting_tile(dim, max_tile, fits):
    """Largest multiple of 128 dividing `dim` (<= max_tile) with fits(t) True.
    Falls back to the smallest dividing 128-multiple, then to the full dim."""
    cap = min(max_tile, dim)
    divisors = [t for t in range(_LANE, cap + 1, _LANE) if dim % t == 0]
    if not divisors:
        return dim
    for t in reversed(divisors):
        if fits(t):
            return t
    return divisors[0]


def _pick_tile_m(m):
    # ~256 rows matches the 256x256 MXU on v6e/v7x; multiple of 16 keeps bf16 blocks
    # sublane-aligned.
    return min(_round_up(max(m, 1), 16), 256)


def _pad_rows(x, tile_m):
    m = x.shape[0]
    pad = (-m) % tile_m
    if pad:
        x = jnp.pad(x, ((0, pad), (0, 0)))
    return x


# ----------------------------------------------------------------------------
# Pallas kernels
# ----------------------------------------------------------------------------
def _encoder_kernel(x_ref, w_ref, b_ref, o_ref):
    # acts = relu(x @ W_enc + b_enc) for one (M tile, N tile)
    pre = jnp.dot(x_ref[...], w_ref[...], preferred_element_type=jnp.float32)
    o_ref[...] = jnp.maximum(pre + b_ref[...], 0.0)


def encode_matmul_pallas(x, W_enc, b_enc, *, matmul_dtype=jnp.bfloat16):
    """relu(x @ W_enc + b_enc) for x:(M, D), W_enc:(D, F). Returns f32 (M, F)."""
    M, D = x.shape
    D2, F = W_enc.shape
    assert D2 == D
    if matmul_dtype is not None:
        x = x.astype(matmul_dtype)
        W_enc = W_enc.astype(matmul_dtype)
    isz = jnp.dtype(x.dtype).itemsize

    tile_m = _pick_tile_m(M)
    xp = _pad_rows(x, tile_m)
    Mp = xp.shape[0]
    budget = _vmem_budget_bytes()

    def fits(tn):
        need = 2 * (tile_m * D * isz + D * tn * isz + tn * 4 + tile_m * tn * 4)
        return need + (4 << 20) <= budget

    tile_n = _largest_fitting_tile(F, 2048, fits)
    b2 = b_enc.reshape(1, F).astype(jnp.float32)

    out = pl.pallas_call(
        _encoder_kernel,
        out_shape=jax.ShapeDtypeStruct((Mp, F), jnp.float32),
        grid_spec=pl.GridSpec(
            grid=(Mp // tile_m, F // tile_n),
            in_specs=[
                pl.BlockSpec((tile_m, D), lambda i, j: (i, 0)),
                pl.BlockSpec((D, tile_n), lambda i, j: (0, j)),
                pl.BlockSpec((1, tile_n), lambda i, j: (0, j)),
            ],
            out_specs=pl.BlockSpec((tile_m, tile_n), lambda i, j: (i, j)),
        ),
        compiler_params=pltpu.CompilerParams(
            dimension_semantics=("parallel", "parallel"),
            vmem_limit_bytes=budget,
        ),
    )(xp, W_enc, b2)
    return out[:M]


def _dual_decoder_kernel(a_ref, wen_ref, wes_ref, oen_ref, oes_ref):
    # One (M tile) x (K tile) step of the dual decode; outputs are f32 and resident
    # across the K ("arbitrary") axis, so we accumulate directly into them.
    k = pl.program_id(1)
    a = a_ref[...]
    den = jnp.dot(a, wen_ref[...], preferred_element_type=jnp.float32)
    des = jnp.dot(a, wes_ref[...], preferred_element_type=jnp.float32)

    @pl.when(k == 0)
    def _():
        oen_ref[...] = den
        oes_ref[...] = des

    @pl.when(k > 0)
    def _():
        oen_ref[...] += den
        oes_ref[...] += des


def decode_dual_pallas(acts, W_dec_en, W_dec_es, *, matmul_dtype=jnp.bfloat16):
    """(acts @ W_dec_en, acts @ W_dec_es), no bias. acts:(M, F), W:(F, D)."""
    M, F = acts.shape
    F2, D = W_dec_en.shape
    assert F2 == F and W_dec_es.shape == (F, D)
    if matmul_dtype is not None:
        acts = acts.astype(matmul_dtype)
        W_dec_en = W_dec_en.astype(matmul_dtype)
        W_dec_es = W_dec_es.astype(matmul_dtype)
    isz = jnp.dtype(acts.dtype).itemsize

    tile_m = _pick_tile_m(M)
    ap = _pad_rows(acts, tile_m)
    Mp = ap.shape[0]
    budget = _vmem_budget_bytes()

    # N axis collapsed to the full act_size D -> activations stream from HBM once.
    def fits(tk):
        need = (2 * (tile_m * tk * isz + 2 * tk * D * isz)  # double-buffered inputs
                + 2 * (2 * tile_m * D * 4))                 # f32 output blocks
        return need + (4 << 20) <= budget

    tile_k = _largest_fitting_tile(F, 2048, fits)

    out_en, out_es = pl.pallas_call(
        _dual_decoder_kernel,
        out_shape=(
            jax.ShapeDtypeStruct((Mp, D), jnp.float32),
            jax.ShapeDtypeStruct((Mp, D), jnp.float32),
        ),
        grid_spec=pl.GridSpec(
            grid=(Mp // tile_m, F // tile_k),
            in_specs=[
                pl.BlockSpec((tile_m, tile_k), lambda i, k: (i, k)),
                pl.BlockSpec((tile_k, D), lambda i, k: (k, 0)),
                pl.BlockSpec((tile_k, D), lambda i, k: (k, 0)),
            ],
            out_specs=(
                pl.BlockSpec((tile_m, D), lambda i, k: (i, 0)),
                pl.BlockSpec((tile_m, D), lambda i, k: (i, 0)),
            ),
        ),
        compiler_params=pltpu.CompilerParams(
            dimension_semantics=("parallel", "arbitrary"),
            vmem_limit_bytes=budget,
        ),
    )(ap, W_dec_en, W_dec_es)
    return out_en[:M], out_es[:M]


# ----------------------------------------------------------------------------
# functional UniversalSAE forward (jitted; Pallas kernels for the hot matmuls)
# ----------------------------------------------------------------------------
def _kaiming_uniform(key, shape):
    # torch.nn.init.kaiming_uniform_ on a raw (act_size, dict_size) tensor:
    # fan_in = shape[1], gain = sqrt(2), bound = gain * sqrt(3 / fan_in)
    fan_in = shape[1]
    bound = math.sqrt(2.0) * math.sqrt(3.0 / fan_in)
    return jax.random.uniform(key, shape, jnp.float32, -bound, bound)


def _preprocess(cfg, x):
    if cfg.get("input_unit_norm", False):
        x_mean = jnp.mean(x, axis=-1, keepdims=True)
        x = x - x_mean
        x_std = jnp.std(x, axis=-1, keepdims=True, ddof=1)  # torch default: unbiased
        x = x / (x_std + 1e-5)
        return x, x_mean, x_std
    return x, None, None


def _postprocess(cfg, x_rec, x_mean, x_std):
    if cfg.get("input_unit_norm", False):
        return x_rec * x_std + x_mean
    return x_rec


def _batch_topk(acts, total_k):
    """Batch-global top-k: per-row top-(total_k) candidates, then a global
    top-(total_k) over the B*total_k candidates.  Exact (modulo tie order)."""
    B, F = acts.shape
    k1 = min(total_k, F)
    row_vals, row_idx = lax.top_k(acts, k1)      # (B, k1)
    cand = row_vals.reshape(-1)                  # (B*k1,)
    vals, cidx = lax.top_k(cand, total_k)        # global over the candidates
    rows = cidx // k1
    cols = row_idx.reshape(-1)[cidx]
    return jnp.zeros_like(acts).at[rows, cols].set(vals)


def _aux_topk(acts, dead_mask, k):
    # Masked equivalent of topk over acts[:, dead]; scattering extra zeros is a no-op.
    masked = acts * dead_mask.astype(acts.dtype)
    vals, idx = lax.top_k(masked, k)
    rows = jnp.arange(acts.shape[0])[:, None]
    return jnp.zeros_like(masked).at[rows, idx].set(vals)


def _update_inactive(nba, acts):
    col = acts.sum(0)
    nba = nba + (col == 0).astype(jnp.float32)
    return jnp.where(col > 0, 0.0, nba)


def _forward_impl(cfg, params, state, x_en, x_es, key):
    f32 = lambda a: a.astype(jnp.float32)
    B = x_en.shape[0]
    D = cfg["act_size"]
    F = cfg["dict_size"]
    be = cfg["bilingual_exposure"]
    bias_val = float(cfg["ratio"])
    mm_dtype = cfg.get("matmul_dtype", jnp.bfloat16)

    # --- language selection (traced; no device->host round trip) ---------------
    if bias_val <= 0:
        lang_idx = jnp.int32(0)
    elif bias_val >= 1:
        lang_idx = jnp.int32(1)
    else:
        u = jax.random.uniform(key, ())
        lang_idx = (u < bias_val).astype(jnp.int32)
    lang_usage = state["lang_usage"].at[lang_idx].add(1.0)
    is_en_first = lang_idx == 0
    en_w = jnp.where(is_en_first, 1.0 - be, be)
    es_w = jnp.where(is_en_first, be, 1.0 - be)

    x_input = jnp.where(is_en_first, x_en, x_es)
    x_prime_in = jnp.where(is_en_first, x_es, x_en)

    # --- fused encoder: both languages in one pallas_call (2B rows) ------------
    x_p, x_mean, x_std = _preprocess(cfg, x_input)
    xp_p, _, _ = _preprocess(cfg, x_prime_in)
    acts_both = encode_matmul_pallas(
        jnp.concatenate([x_p, xp_p], axis=0), params["W_enc"], params["b_enc"],
        matmul_dtype=mm_dtype)
    acts_original = acts_both[:B]
    acts_prime_original = acts_both[B:]

    # batch-global top-k (per encode call, as in the reference)
    total_k = cfg["top_k"] * B
    acts = _batch_topk(acts_original, total_k)
    acts_prime = _batch_topk(acts_prime_original, total_k)

    # sequential inactive-feature state updates (order matches reference forward)
    nba = _update_inactive(state["num_batches_not_active"], acts)
    nba = _update_inactive(nba, acts_prime)

    # dead-feature aux activations
    dead = nba >= cfg["n_batches_to_dead"]
    dead_sum = dead.sum()
    k_aux = min(cfg["top_k_aux"], F)
    acts_aux = _aux_topk(acts_original, dead, k_aux)
    acts_prime_aux = _aux_topk(acts_prime_original, dead, k_aux)

    # --- main dual decode: one pallas_call over the (2B, F) top-k activations ---
    acts_main = jnp.concatenate([acts, acts_prime], axis=0)
    dec_en, dec_es = decode_dual_pallas(
        acts_main, params["W_dec_en"], params["W_dec_es"], matmul_dtype=mm_dtype)
    x_re_en = dec_en[:B] + params["b_dec_en"]
    x_re_es = dec_es[:B] + params["b_dec_es"]
    xp_re_en = dec_en[B:] + params["b_dec_en"]
    xp_re_es = dec_es[B:] + params["b_dec_es"]

    # --- aux dual decode, gated on dead features (skipped when none are dead) ---
    acts_aux_all = jnp.concatenate([acts_aux, acts_prime_aux], axis=0)

    def _do_aux(a):
        return decode_dual_pallas(
            a, params["W_dec_en"], params["W_dec_es"], matmul_dtype=mm_dtype)

    def _skip_aux(a):
        z = jnp.zeros((a.shape[0], D), jnp.float32)
        return z, z

    dec_aux_en, dec_aux_es = lax.cond(dead_sum > 0, _do_aux, _skip_aux, acts_aux_all)
    x_aux_en = dec_aux_en[:B]      # aux reconstruction has no bias (reference)
    x_aux_es = dec_aux_es[:B]
    xp_aux_en = dec_aux_en[B:]
    xp_aux_es = dec_aux_es[B:]

    # --- losses -----------------------------------------------------------------
    l2_loss_en = jnp.mean((f32(x_re_en) - f32(x_en)) ** 2)
    l2_loss_es = jnp.mean((f32(x_re_es) - f32(x_es)) ** 2)
    l2_loss_en_prime = jnp.mean((f32(xp_re_en) - f32(x_en)) ** 2)
    l2_loss_es_prime = jnp.mean((f32(xp_re_es) - f32(x_es)) ** 2)
    num_dead = (nba > cfg["n_batches_to_dead"]).sum() / F
    act_var = (jnp.mean(((acts > 0).astype(jnp.float32).sum(-1) - cfg["top_k"]) ** 2)
               + jnp.mean(((acts_prime > 0).astype(jnp.float32).sum(-1) - cfg["top_k"]) ** 2)) / 2

    def l2norm(a):
        n = jnp.linalg.norm(f32(a), axis=-1, keepdims=True)
        return f32(a) / jnp.maximum(n, 1e-12)

    acts_norm = l2norm(acts)
    acts_prime_norm = l2norm(acts_prime)
    acts_norm_o = l2norm(acts_original)
    acts_prime_norm_o = l2norm(acts_prime_original)
    mse = jnp.mean((acts - acts_prime) ** 2)
    mse_original = jnp.mean((acts_original - acts_prime_original) ** 2)
    cos_sim = jnp.mean((acts_norm * acts_prime_norm).sum(-1))
    cos_sim_original = jnp.mean((acts_norm_o * acts_prime_norm_o).sum(-1))
    convergence = (1 - cos_sim) * cfg["convergence_coeff"]

    l2_loss_en_w = en_w * l2_loss_en
    l2_loss_es_w = es_w * l2_loss_es
    l2_diff = l2_loss_en - l2_loss_es
    l2_loss = l2_loss_en_w + l2_loss_es_w
    l2_loss_en_p_w = en_w * l2_loss_en_prime
    l2_loss_es_p_w = es_w * l2_loss_es_prime
    l2_diff_prime = l2_loss_en_prime - l2_loss_es_prime
    l2_loss_prime = l2_loss_en_p_w + l2_loss_es_p_w
    l2 = (l2_loss + l2_loss_prime) / 2

    l1_per_feat_p = jnp.abs(f32(acts_prime)).sum() / jnp.maximum(
        (acts_prime > 0).astype(jnp.float32).sum(), 1.0)
    l1_per_feat = jnp.abs(f32(acts)).sum() / jnp.maximum(
        (acts > 0).astype(jnp.float32).sum(), 1.0)
    l1_norm = jnp.mean(jnp.abs(f32(acts)).sum(-1))
    l1_norm_prime = jnp.mean(jnp.abs(f32(acts_prime)).sum(-1))
    l1_loss = cfg["l1_coeff"] * l1_norm
    l1_loss_prime = cfg["l1_coeff"] * l1_norm_prime
    l1 = (l1_loss + l1_loss_prime) / 2

    l0_eps = jnp.mean((acts > cfg["l0_epsilon"]).astype(jnp.float32).sum(-1))
    l0_eps_prime = jnp.mean((acts_prime > cfg["l0_epsilon"]).astype(jnp.float32).sum(-1))
    l0_norm = jnp.mean((acts > 0).astype(jnp.float32).sum(-1))
    l0_norm_prime = jnp.mean((acts_prime > 0).astype(jnp.float32).sum(-1))
    l0 = (l0_norm + l0_norm_prime) / 2

    def aux_loss_of(x_rec_en, x_rec_es, x_aux_rec_en, x_aux_rec_es):
        residual_en = f32(x_en) - f32(x_rec_en)
        residual_es = f32(x_es) - f32(x_rec_es)
        l2_aux_en = jnp.mean((f32(x_aux_rec_en) - residual_en) ** 2)
        l2_aux_es = jnp.mean((f32(x_aux_rec_es) - residual_es) ** 2)
        tot = cfg["aux_penalty"] * (en_w * l2_aux_en + es_w * l2_aux_es)
        return jnp.where(dead_sum > 0, tot, jnp.float32(0.0))

    aux_loss = aux_loss_of(x_re_en, x_re_es, x_aux_en, x_aux_es)
    aux_loss_prime = aux_loss_of(xp_re_en, xp_re_es, xp_aux_en, xp_aux_es)
    aux = (aux_loss + aux_loss_prime) / 2
    loss = l2 + l1 + aux + convergence

    sae_out = _postprocess(cfg, jnp.where(is_en_first, x_re_en, x_re_es), x_mean, x_std)

    out = {
        "sae_out": sae_out, "feature_acts": acts, "num_dead_features": num_dead,
        "loss": loss, "l1_loss": l1_loss, "l1_loss_prime": l1_loss_prime,
        "l1_normalized": l1_loss / cfg["l1_coeff"],
        "l1_normalized_prime": l1_loss_prime / cfg["l1_coeff"],
        "l2_loss": l2_loss, "l2_loss_prime": l2_loss_prime,
        "l2_loss_en": l2_loss_en_w, "l2_loss_en_prime": l2_loss_en_p_w,
        "l2_loss_es": l2_loss_es_w, "l2_loss_es_prime": l2_loss_es_p_w,
        "l2_norm_diff": l2_diff, "l2_norm_diff_prime": l2_diff_prime,
        "convergence_loss": convergence, "convergence": 1 - cos_sim,
        "convergence_original": 1 - cos_sim_original,
        "mse_convergence": mse, "mse_original": mse_original,
        "cos_convergence": 1 - cos_sim, "l0_norm": l0, "l0_norm_prime": l0_norm_prime,
        "l0_norm_epsilon": l0_eps, "l0_norm_epsilon_prime": l0_eps_prime,
        "l1_norm": l1_norm, "l1_norm_prime": l1_norm_prime,
        "aux_loss": aux_loss, "aux_loss_prime": aux_loss_prime,
        "aux_normalized": aux_loss / cfg["aux_penalty"],
        "aux_normalized_prime": aux_loss_prime / cfg["aux_penalty"],
        "selected_lang": lang_idx,
        "l1_norm_per_feature": l1_per_feat, "l1_norm_per_feature_prime": l1_per_feat_p,
        "activation_variance": act_var,
    }
    new_state = {"num_batches_not_active": nba, "lang_usage": lang_usage}
    return out, new_state


class UniversalSAEJax:
    """Functional JAX/Pallas port of UniversalSAE (forward pass)."""

    def __init__(self, cfg, key):
        self.cfg = dict(cfg)
        D, F = cfg["act_size"], cfg["dict_size"]
        k_enc, _ = jax.random.split(key)
        W_enc = _kaiming_uniform(k_enc, (D, F))
        W_dec = W_enc.T
        W_dec = W_dec / jnp.linalg.norm(W_dec, axis=-1, keepdims=True)
        self.params = {
            "W_enc": W_enc,
            "b_enc": jnp.zeros((F,), jnp.float32),
            "W_dec_en": W_dec,
            "b_dec_en": jnp.zeros((D,), jnp.float32),
            "W_dec_es": W_dec,
            "b_dec_es": jnp.zeros((D,), jnp.float32),
        }
        self.state = {
            "num_batches_not_active": jnp.zeros((F,), jnp.float32),
            "lang_usage": jnp.zeros((2,), jnp.float32),
        }
        cfg_static = dict(self.cfg)
        self._forward_jit = jax.jit(
            lambda params, state, x_en, x_es, key_:
                _forward_impl(cfg_static, params, state, x_en, x_es, key_))

    def forward(self, x_en, x_es, key):
        out, new_state = self._forward_jit(self.params, self.state, x_en, x_es, key)
        self.state = new_state
        # static / non-array entries from the reference output dict
        out["ratio"] = self.cfg["ratio"]
        out["conv"] = "last"
        return out


# ----------------------------------------------------------------------------
if __name__ == "__main__":
    cfg = {
        "seed": 0,
        "act_size": 128,
        "dict_size": 256,
        "top_k": 4,
        "top_k_aux": 8,
        "n_batches_to_dead": 1,
        "aux_penalty": 1.0 / 32,
        "l1_coeff": 3e-4,
        "convergence_coeff": 0.1,
        "l0_epsilon": 1e-6,
        "input_unit_norm": True,
        "ratio": 0.2,
        "bilingual_exposure": 0.1,
        # MXU operands default to bf16 (f32 accumulation). For exact f32 parity:
        # "matmul_dtype": jnp.float32,
    }
    key = jax.random.PRNGKey(0)
    k_param, k_en, k_es, k_lang = jax.random.split(key, 4)
    B = 8
    x_en = jax.random.normal(k_en, (B, cfg["act_size"]), jnp.float32)
    x_es = jax.random.normal(k_es, (B, cfg["act_size"]), jnp.float32)

    sae = UniversalSAEJax(cfg, k_param)
    out = sae.forward(x_en, x_es, k_lang)
    jax.block_until_ready(out["loss"])
    jax.block_until_ready(out["sae_out"])
    print("KERNEL_OK")
</pallas_src>

<mosaic_0001>
module attributes {stable_mosaic.version = 11 : i64} {
  func.func @_encoder_kernel(%arg0: i32, %arg1: i32, %arg2: memref<16x128xbf16, #tpu.memory_space<vmem>>, %arg3: memref<128x256xbf16, #tpu.memory_space<vmem>>, %arg4: memref<1x256xf32, #tpu.memory_space<vmem>>, %arg5: memref<16x256xf32, #tpu.memory_space<vmem>>) attributes {dimension_semantics = [#tpu.dimension_semantics<parallel>, #tpu.dimension_semantics<parallel>], iteration_bounds = array<i64: 1, 1>, scalar_prefetch = 0 : i64, scratch_operands = 0 : i64, tpu.core_type = #tpu.core_type<tc>, window_params = [{transform_indices = @transform_0, window_bounds = array<i64: 16, 128>}, {transform_indices = @transform_1, window_bounds = array<i64: 128, 256>}, {transform_indices = @transform_2, window_bounds = array<i64: 1, 256>}, {transform_indices = @transform_3, window_bounds = array<i64: 16, 256>}]} {
    %c0 = arith.constant 0 : index
    %c0_0 = arith.constant 0 : index
    %0 = vector.load %arg2[%c0, %c0_0] : memref<16x128xbf16, #tpu.memory_space<vmem>>, vector<16x128xbf16>
    %c0_1 = arith.constant 0 : index
    %c0_2 = arith.constant 0 : index
    %1 = vector.load %arg3[%c0_1, %c0_2] : memref<128x256xbf16, #tpu.memory_space<vmem>>, vector<128x256xbf16>
    %cst = arith.constant dense<0.000000e+00> : vector<16x256xf32>
    %2 = tpu.matmul %0, %1, %cst {dimension_numbers = #tpu.dot_dimension_numbers<[1], [0], [0], [1], [0, 0, 1, 1], [], []>} : vector<16x128xbf16>, vector<128x256xbf16>, vector<16x256xf32> -> vector<16x256xf32>
    %c0_3 = arith.constant 0 : index
    %c0_4 = arith.constant 0 : index
    %3 = vector.load %arg4[%c0_3, %c0_4] : memref<1x256xf32, #tpu.memory_space<vmem>>, vector<1x256xf32>
    %4 = vector.broadcast %3 : vector<1x256xf32> to vector<16x256xf32>
    %5 = arith.addf %2, %4 : vector<16x256xf32>
    %cst_5 = arith.constant 0.000000e+00 : f32
    %6 = vector.broadcast %cst_5 : f32 to vector<16x256xf32>
    %7 = arith.maximumf %5, %6 : vector<16x256xf32>
    %c0_6 = arith.constant 0 : index
    %c0_7 = arith.constant 0 : index
    %8 = vector.load %arg5[%c0_6, %c0_7] : memref<16x256xf32, #tpu.memory_space<vmem>>, vector<16x256xf32>
    tpu.vector_store %arg5[%c0_6, %c0_7], %7 {strides = array<i32>} : memref<16x256xf32, #tpu.memory_space<vmem>>, vector<16x256xf32>,
    return
  }
  func.func @transform_0(%arg0: i32, %arg1: i32) -> (i32, i32) {
    %c0_i32 = arith.constant 0 : i32
    %c0_i32_0 = arith.constant 0 : i32
    return %arg0, %c0_i32 : i32, i32
  }
  func.func @transform_1(%arg0: i32, %arg1: i32) -> (i32, i32) {
    %c0_i32 = arith.constant 0 : i32
    %c0_i32_0 = arith.constant 0 : i32
    return %c0_i32, %arg1 : i32, i32
  }
  func.func @transform_2(%arg0: i32, %arg1: i32) -> (i32, i32) {
    %c0_i32 = arith.constant 0 : i32
    %c0_i32_0 = arith.constant 0 : i32
    return %c0_i32, %arg1 : i32, i32
  }
  func.func @transform_3(%arg0: i32, %arg1: i32) -> (i32, i32) {
    %c0_i32 = arith.constant 0 : i32
    return %arg0, %arg1 : i32, i32
  }
}

module attributes {stable_mosaic.version = 11 : i64} {
  func.func @_dual_decoder_kernel(%arg0: i32, %arg1: i32, %arg2: memref<16x256xbf16, #tpu.memory_space<vmem>>, %arg3: memref<256x128xbf16, #tpu.memory_space<vmem>>, %arg4: memref<256x128xbf16, #tpu.memory_space<vmem>>, %arg5: memref<16x128xf32, #tpu.memory_space<vmem>>, %arg6: memref<16x128xf32, #tpu.memory_space<vmem>>) attributes {dimension_semantics = [#tpu.dimension_semantics<parallel>, #tpu.dimension_semantics<arbitrary>], iteration_bounds = array<i64: 1, 1>, scalar_prefetch = 0 : i64, scratch_operands = 0 : i64, tpu.core_type = #tpu.core_type<tc>, window_params = [{transform_indices = @transform_0, window_bounds = array<i64: 16, 256>}, {transform_indices = @transform_1, window_bounds = array<i64: 256, 128>}, {transform_indices = @transform_2, window_bounds = array<i64: 256, 128>}, {transform_indices = @transform_3, window_bounds = array<i64: 16, 128>}, {transform_indices = @transform_4, window_bounds = array<i64: 16, 128>}]} {
    %c0 = arith.constant 0 : index
    %c0_0 = arith.constant 0 : index
    %0 = vector.load %arg2[%c0, %c0_0] : memref<16x256xbf16, #tpu.memory_space<vmem>>, vector<16x256xbf16>
    %c0_1 = arith.constant 0 : index
    %c0_2 = arith.constant 0 : index
    %1 = vector.load %arg3[%c0_1, %c0_2] : memref<256x128xbf16, #tpu.memory_space<vmem>>, vector<256x128xbf16>
    %cst = arith.constant dense<0.000000e+00> : vector<16x128xf32>
    %2 = tpu.matmul %0, %1, %cst {dimension_numbers = #tpu.dot_dimension_numbers<[1], [0], [0], [1], [0, 0, 1, 1], [], []>} : vector<16x256xbf16>, vector<256x128xbf16>, vector<16x128xf32> -> vector<16x128xf32>
    %c0_3 = arith.constant 0 : index
    %c0_4 = arith.constant 0 : index
    %3 = vector.load %arg4[%c0_3, %c0_4] : memref<256x128xbf16, #tpu.memory_space<vmem>>, vector<256x128xbf16>
    %cst_5 = arith.constant dense<0.000000e+00> : vector<16x128xf32>
    %4 = tpu.matmul %0, %3, %cst_5 {dimension_numbers = #tpu.dot_dimension_numbers<[1], [0], [0], [1], [0, 0, 1, 1], [], []>} : vector<16x256xbf16>, vector<256x128xbf16>, vector<16x128xf32> -> vector<16x128xf32>
    %c0_i32 = arith.constant 0 : i32
    %5 = arith.cmpi eq, %arg1, %c0_i32 : i32
    %6 = arith.extui %5 : i1 to i32
    %c0_i32_6 = arith.constant 0 : i32
    %7 = arith.cmpi ne, %6, %c0_i32_6 : i32
    scf.if %7 {
      %c0_9 = arith.constant 0 : index
      %c0_10 = arith.constant 0 : index
      %11 = vector.load %arg5[%c0_9, %c0_10] : memref<16x128xf32, #tpu.memory_space<vmem>>, vector<16x128xf32>
      tpu.vector_store %arg5[%c0_9, %c0_10], %2 {strides = array<i32>} : memref<16x128xf32, #tpu.memory_space<vmem>>, vector<16x128xf32>,
      %c0_11 = arith.constant 0 : index
      %c0_12 = arith.constant 0 : index
      %12 = vector.load %arg6[%c0_11, %c0_12] : memref<16x128xf32, #tpu.memory_space<vmem>>, vector<16x128xf32>
      tpu.vector_store %arg6[%c0_11, %c0_12], %4 {strides = array<i32>} : memref<16x128xf32, #tpu.memory_space<vmem>>, vector<16x128xf32>,
    } else {
    }
    %c0_i32_7 = arith.constant 0 : i32
    %8 = arith.cmpi sgt, %arg1, %c0_i32_7 : i32
    %9 = arith.extui %8 : i1 to i32
    %c0_i32_8 = arith.constant 0 : i32
    %10 = arith.cmpi ne, %9, %c0_i32_8 : i32
    scf.if %10 {
      %c0_9 = arith.constant 0 : index
      %c0_10 = arith.constant 0 : index
      %11 = vector.load %arg5[%c0_9, %c0_10] : memref<16x128xf32, #tpu.memory_space<vmem>>, vector<16x128xf32>
      %12 = arith.addf %11, %2 : vector<16x128xf32>
      %c0_11 = arith.constant 0 : index
      %c0_12 = arith.constant 0 : index
      %13 = vector.load %arg5[%c0_11, %c0_12] : memref<16x128xf32, #tpu.memory_space<vmem>>, vector<16x128xf32>
      tpu.vector_store %arg5[%c0_11, %c0_12], %12 {strides = array<i32>} : memref<16x128xf32, #tpu.memory_space<vmem>>, vector<16x128xf32>,
      %c0_13 = arith.constant 0 : index
      %c0_14 = arith.constant 0 : index
      %14 = vector.load %arg6[%c0_13, %c0_14] : memref<16x128xf32, #tpu.memory_space<vmem>>, vector<16x128xf32>
      %15 = arith.addf %14, %4 : vector<16x128xf32>
      %c0_15 = arith.constant 0 : index
      %c0_16 = arith.constant 0 : index
      %16 = vector.load %arg6[%c0_15, %c0_16] : memref<16x128xf32, #tpu.memory_space<vmem>>, vector<16x128xf32>
      tpu.vector_store %arg6[%c0_15, %c0_16], %15 {strides = array<i32>} : memref<16x128xf32, #tpu.memory_space<vmem>>, vector<16x128xf32>,
    } else {
    }
    return
  }
  func.func @transform_0(%arg0: i32, %arg1: i32) -> (i32, i32) {
    %c0_i32 = arith.constant 0 : i32
    return %arg0, %arg1 : i32, i32
  }
  func.func @transform_1(%arg0: i32, %arg1: i32) -> (i32, i32) {
    %c0_i32 = arith.constant 0 : i32
    %c0_i32_0 = arith.constant 0 : i32
    return %arg1, %c0_i32 : i32, i32
  }
  func.func @transform_2(%arg0: i32, %arg1: i32) -> (i32, i32) {
    %c0_i32 = arith.constant 0 : i32
    %c0_i32_0 = arith.constant 0 : i32
    return %arg1, %c0_i32 : i32, i32
  }
  func.func @transform_3(%arg0: i32, %arg1: i32) -> (i32, i32) {
    %c0_i32 = arith.constant 0 : i32
    %c0_i32_0 = arith.constant 0 : i32
    return %arg0, %c0_i32 : i32, i32
  }
  func.func @transform_4(%arg0: i32, %arg1: i32) -> (i32, i32) {
    %c0_i32 = arith.constant 0 : i32
    %c0_i32_0 = arith.constant 0 : i32
    return %arg0, %c0_i32 : i32, i32
  }
}

module attributes {stable_mosaic.version = 11 : i64} {
  func.func @_dual_decoder_kernel(%arg0: i32, %arg1: i32, %arg2: memref<16x256xbf16, #tpu.memory_space<vmem>>, %arg3: memref<256x128xbf16, #tpu.memory_space<vmem>>, %arg4: memref<256x128xbf16, #tpu.memory_space<vmem>>, %arg5: memref<16x128xf32, #tpu.memory_space<vmem>>, %arg6: memref<16x128xf32, #tpu.memory_space<vmem>>) attributes {dimension_semantics = [#tpu.dimension_semantics<parallel>, #tpu.dimension_semantics<arbitrary>], iteration_bounds = array<i64: 1, 1>, scalar_prefetch = 0 : i64, scratch_operands = 0 : i64, tpu.core_type = #tpu.core_type<tc>, window_params = [{transform_indices = @transform_0, window_bounds = array<i64: 16, 256>}, {transform_indices = @transform_1, window_bounds = array<i64: 256, 128>}, {transform_indices = @transform_2, window_bounds = array<i64: 256, 128>}, {transform_indices = @transform_3, window_bounds = array<i64: 16, 128>}, {transform_indices = @transform_4, window_bounds = array<i64: 16, 128>}]} {
    %c0 = arith.constant 0 : index
    %c0_0 = arith.constant 0 : index
    %0 = vector.load %arg2[%c0, %c0_0] : memref<16x256xbf16, #tpu.memory_space<vmem>>, vector<16x256xbf16>
    %c0_1 = arith.constant 0 : index
    %c0_2 = arith.constant 0 : index
    %1 = vector.load %arg3[%c0_1, %c0_2] : memref<256x128xbf16, #tpu.memory_space<vmem>>, vector<256x128xbf16>
    %cst = arith.constant dense<0.000000e+00> : vector<16x128xf32>
    %2 = tpu.matmul %0, %1, %cst {dimension_numbers = #tpu.dot_dimension_numbers<[1], [0], [0], [1], [0, 0, 1, 1], [], []>} : vector<16x256xbf16>, vector<256x128xbf16>, vector<16x128xf32> -> vector<16x128xf32>
    %c0_3 = arith.constant 0 : index
    %c0_4 = arith.constant 0 : index
    %3 = vector.load %arg4[%c0_3, %c0_4] : memref<256x128xbf16, #tpu.memory_space<vmem>>, vector<256x128xbf16>
    %cst_5 = arith.constant dense<0.000000e+00> : vector<16x128xf32>
    %4 = tpu.matmul %0, %3, %cst_5 {dimension_numbers = #tpu.dot_dimension_numbers<[1], [0], [0], [1], [0, 0, 1, 1], [], []>} : vector<16x256xbf16>, vector<256x128xbf16>, vector<16x128xf32> -> vector<16x128xf32>
    %c0_i32 = arith.constant 0 : i32
    %5 = arith.cmpi eq, %arg1, %c0_i32 : i32
    %6 = arith.extui %5 : i1 to i32
    %c0_i32_6 = arith.constant 0 : i32
    %7 = arith.cmpi ne, %6, %c0_i32_6 : i32
    scf.if %7 {
      %c0_9 = arith.constant 0 : index
      %c0_10 = arith.constant 0 : index
      %11 = vector.load %arg5[%c0_9, %c0_10] : memref<16x128xf32, #tpu.memory_space<vmem>>, vector<16x128xf32>
      tpu.vector_store %arg5[%c0_9, %c0_10], %2 {strides = array<i32>} : memref<16x128xf32, #tpu.memory_space<vmem>>, vector<16x128xf32>,
      %c0_11 = arith.constant 0 : index
      %c0_12 = arith.constant 0 : index
      %12 = vector.load %arg6[%c0_11, %c0_12] : memref<16x128xf32, #tpu.memory_space<vmem>>, vector<16x128xf32>
      tpu.vector_store %arg6[%c0_11, %c0_12], %4 {strides = array<i32>} : memref<16x128xf32, #tpu.memory_space<vmem>>, vector<16x128xf32>,
    } else {
    }
    %c0_i32_7 = arith.constant 0 : i32
    %8 = arith.cmpi sgt, %arg1, %c0_i32_7 : i32
    %9 = arith.extui %8 : i1 to i32
    %c0_i32_8 = arith.constant 0 : i32
    %10 = arith.cmpi ne, %9, %c0_i32_8 : i32
    scf.if %10 {
      %c0_9 = arith.constant 0 : index
      %c0_10 = arith.constant 0 : index
      %11 = vector.load %arg5[%c0_9, %c0_10] : memref<16x128xf32, #tpu.memory_space<vmem>>, vector<16x128xf32>
      %12 = arith.addf %11, %2 : vector<16x128xf32>
      %c0_11 = arith.constant 0 : index
      %c0_12 = arith.constant 0 : index
      %13 = vector.load %arg5[%c0_11, %c0_12] : memref<16x128xf32, #tpu.memory_space<vmem>>, vector<16x128xf32>
      tpu.vector_store %arg5[%c0_11, %c0_12], %12 {strides = array<i32>} : memref<16x128xf32, #tpu.memory_space<vmem>>, vector<16x128xf32>,
      %c0_13 = arith.constant 0 : index
      %c0_14 = arith.constant 0 : index
      %14 = vector.load %arg6[%c0_13, %c0_14] : memref<16x128xf32, #tpu.memory_space<vmem>>, vector<16x128xf32>
      %15 = arith.addf %14, %4 : vector<16x128xf32>
      %c0_15 = arith.constant 0 : index
      %c0_16 = arith.constant 0 : index
      %16 = vector.load %arg6[%c0_15, %c0_16] : memref<16x128xf32, #tpu.memory_space<vmem>>, vector<16x128xf32>
      tpu.vector_store %arg6[%c0_15, %c0_16], %15 {strides = array<i32>} : memref<16x128xf32, #tpu.memory_space<vmem>>, vector<16x128xf32>,
    } else {
    }
    return
  }
  func.func @transform_0(%arg0: i32, %arg1: i32) -> (i32, i32) {
    %c0_i32 = arith.constant 0 : i32
    return %arg0, %arg1 : i32, i32
  }
  func.func @transform_1(%arg0: i32, %arg1: i32) -> (i32, i32) {
    %c0_i32 = arith.constant 0 : i32
    %c0_i32_0 = arith.constant 0 : i32
    return %arg1, %c0_i32 : i32, i32
  }
  func.func @transform_2(%arg0: i32, %arg1: i32) -> (i32, i32) {
    %c0_i32 = arith.constant 0 : i32
    %c0_i32_0 = arith.constant 0 : i32
    return %arg1, %c0_i32 : i32, i32
  }
  func.func @transform_3(%arg0: i32, %arg1: i32) -> (i32, i32) {
    %c0_i32 = arith.constant 0 : i32
    %c0_i32_0 = arith.constant 0 : i32
    return %arg0, %c0_i32 : i32, i32
  }
  func.func @transform_4(%arg0: i32, %arg1: i32) -> (i32, i32) {
    %c0_i32 = arith.constant 0 : i32
    %c0_i32_0 = arith.constant 0 : i32
    return %arg0, %c0_i32 : i32, i32
  }
}

</mosaic_0001>

<llo_original>
// kernel: _lambda_.2
$region0: #{_lambda_.2}
  #allocation0 [shape = 'u32[]', space=smem, size = 0x4, offset = 0x4, fixed_abs, tag = 'smem constant byte address 0x4 - core index']
  #allocation1 [shape = 'u32[144,128]{1,0:T(1,128)}', space=vmem, size = 0x12000, scoped, tag = 'internal scratch']
  %s0 = inlined_call_operand.vmem [shape: bf16[16,128], index: 0, kind: input, shape index: {}]
  %s1 = inlined_call_operand.vmem [shape: bf16[128,256], index: 1, kind: input, shape index: {}]
  %s2 = inlined_call_operand.vmem [shape: f32[1,256], index: 2, kind: input, shape index: {}]
  %s3 = inlined_call_operand.vmem [shape: f32[16,256], index: 3, kind: output, shape index: {}]
  %s4 = sld [smem:[#allocation0]]
  $region22: #{_lambda_.2} parent=0
    _
  %s6 = ssub.s32 1, %s4
  %s7 = scalar_select 0, %s6, %s4
  // Predicated region
  $region2: #{_lambda_.2} parent=0 // pred_check
    _
  $region3: #{_lambda_.2} parent=0 // pred_check_branch
    %9 = sbr.rel (0) target = $region5
  $region4: #{_lambda_.2} parent=0 // pred_region
    _
  $region5: #{_lambda_.2} parent=0 // pred_fallthru
    _
  // Predicated region
  $region6: #{_lambda_.2} parent=0 // pred_check
    _
  $region7: #{_lambda_.2} parent=0 // pred_check_branch
    %11 = sbr.rel (0) target = $region9
  $region8: #{_lambda_.2} parent=0 // pred_region
    _
  $region9: #{_lambda_.2} parent=0 // pred_fallthru
    _
  // Predicated region
  $region10: #{_lambda_.2} parent=0 // pred_check
    _
  $region11: #{_lambda_.2} parent=0 // pred_check_branch
    %13 = sbr.rel (0) target = $region13
  $region12: #{_lambda_.2} parent=0 // pred_region
    _
  $region13: #{_lambda_.2} parent=0 // pred_fallthru
    _
  %v15 = vld [vmem:[%s0] sm:$0xf]
  %v16 = vld [vmem:[%s0 + $0x4] sm:$0xf]
  %v17 = vld [vmem:[%s1] sm:$0xff]
  %v18 = vld [vmem:[%s1 + $0x8] sm:$0xff]
  %v19 = vld [vmem:[%s1 + $0x10] sm:$0xff]
  %v20 = vld [vmem:[%s1 + $0x18] sm:$0xff]
  %v21 = vld [vmem:[%s1 + $0x20] sm:$0xff]
  %v22 = vld [vmem:[%s1 + $0x28] sm:$0xff]
  %v23 = vld [vmem:[%s1 + $0x30] sm:$0xff]
  %v24 = vld [vmem:[%s1 + $0x38] sm:$0xff]
  %v25 = vld [vmem:[%s1 + $0x40] sm:$0xff]
  %v26 = vld [vmem:[%s1 + $0x48] sm:$0xff]
  %v27 = vld [vmem:[%s1 + $0x50] sm:$0xff]
  %v28 = vld [vmem:[%s1 + $0x58] sm:$0xff]
  %v29 = vld [vmem:[%s1 + $0x60] sm:$0xff]
  %v30 = vld [vmem:[%s1 + $0x68] sm:$0xff]
  %v31 = vld [vmem:[%s1 + $0x70] sm:$0xff]
  %v32 = vld [vmem:[%s1 + $0x78] sm:$0xff]
  %v33 = vld [vmem:[%s2] sm:$0x3]
  %v35 = vlaneseq
  %v36 = vshrl.u32 %v35, 7
  %v37 = vsub.s32 0, %v36
  %v38 = vrot.slane %v33, %v37
  %v39 = vlaneseq
  %v40 = vshrl.u32 %v39, 7
  %v41 = vsub.s32 1, %v40
  %v42 = vrot.slane %v33, %v41
  %v47 = vunpack.c.l.b16 %v15
  %v48 = vunpack.c.l.b16 %v16
  %v49 = vpack.c.b16 %v48, %v47
  %v67 = vunpack.c.l.b16 %v17
  %v68 = vunpack.c.h.b16 %v17
  %v69 = vunpack.c.l.b16 %v18
  %v70 = vunpack.c.h.b16 %v18
  %v71 = vunpack.c.l.b16 %v19
  %v72 = vunpack.c.h.b16 %v19
  %v73 = vunpack.c.l.b16 %v20
  %v74 = vunpack.c.h.b16 %v20
  %v75 = vunpack.c.l.b16 %v21
  %v76 = vunpack.c.h.b16 %v21
  %v77 = vunpack.c.l.b16 %v22
  %v78 = vunpack.c.h.b16 %v22
  %v79 = vunpack.c.l.b16 %v23
  %v80 = vunpack.c.h.b16 %v23
  %v81 = vunpack.c.l.b16 %v24
  %v82 = vunpack.c.h.b16 %v24
  %v83 = vunpack.c.l.b16 %v25
  %v84 = vunpack.c.h.b16 %v25
  %v85 = vunpack.c.l.b16 %v26
  %v86 = vunpack.c.h.b16 %v26
  %v87 = vunpack.c.l.b16 %v27
  %v88 = vunpack.c.h.b16 %v27
  %v89 = vunpack.c.l.b16 %v28
  %v90 = vunpack.c.h.b16 %v28
  %v91 = vunpack.c.l.b16 %v29
  %v92 = vunpack.c.h.b16 %v29
  %v93 = vunpack.c.l.b16 %v30
  %v94 = vunpack.c.h.b16 %v30
  %v95 = vunpack.c.l.b16 %v31
  %v96 = vunpack.c.h.b16 %v31
  %v97 = vunpack.c.l.b16 %v32
  %v98 = vunpack.c.h.b16 %v32
  %v99 = vpack.c.b16 %v69, %v67
  %v100 = vpack.c.b16 %v70, %v68
  %v101 = vpack.c.b16 %v73, %v71
  %v102 = vpack.c.b16 %v74, %v72
  %v103 = vpack.c.b16 %v77, %v75
  %v104 = vpack.c.b16 %v78, %v76
  %v105 = vpack.c.b16 %v81, %v79
  %v106 = vpack.c.b16 %v82, %v80
  %v107 = vpack.c.b16 %v85, %v83
  %v108 = vpack.c.b16 %v86, %v84
  %v109 = vpack.c.b16 %v89, %v87
  %v110 = vpack.c.b16 %v90, %v88
  %v111 = vpack.c.b16 %v93, %v91
  %v112 = vpack.c.b16 %v94, %v92
  %v113 = vpack.c.b16 %v97, %v95
  %v114 = vpack.c.b16 %v98, %v96
  %131 = vmatprep.subr.bf16.mxu0 %v100
  %132 = vmatpush1.bf16.msra.mxu0 %v99
  %133 = vmatprep.subr.bf16.mxu0 %v102
  %134 = vmatpush1.bf16.msra.mxu0 %v101
  %135 = vmatprep.subr.bf16.mxu0 %v104
  %136 = vmatpush1.bf16.msra.mxu0 %v103
  %137 = vmatprep.subr.bf16.mxu0 %v106
  %138 = vmatpush1.bf16.msra.mxu0 %v105
  %139 = vmatprep.subr.bf16.mxu0 %v108
  %140 = vmatpush1.bf16.msra.mxu0 %v107
  %141 = vmatprep.subr.bf16.mxu0 %v110
  %142 = vmatpush1.bf16.msra.mxu0 %v109
  %143 = vmatprep.subr.bf16.mxu0 %v112
  %144 = vmatpush1.bf16.msra.mxu0 %v111
  %145 = vmatprep.subr.bf16.mxu0 %v114
  %146 = vmatpush1.bf16.msra.mxu0 %v113
  %147 = vmatprep.subr.bf16.mxu0 0
  %148 = vmatpush1.bf16.msra.mxu0 0
  %149 = vmatprep.subr.bf16.mxu0 0
  %150 = vmatpush1.bf16.msra.mxu0 0
  %151 = vmatprep.subr.bf16.mxu0 0
  %152 = vmatpush1.bf16.msra.mxu0 0
  %153 = vmatprep.subr.bf16.mxu0 0
  %154 = vmatpush1.bf16.msra.mxu0 0
  %155 = vmatprep.subr.bf16.mxu0 0
  %156 = vmatpush1.bf16.msra.mxu0 0
  %157 = vmatprep.subr.bf16.mxu0 0
  %158 = vmatpush1.bf16.msra.mxu0 0
  %159 = vmatprep.subr.bf16.mxu0 0
  %160 = vmatpush1.bf16.msra.mxu0 0
  %161 = vmatprep.subr.bf16.mxu0 0
  %162 = vmatpush1.bf16.msra.mxu0 0
  %163 = vmatprep.mubr.bf16.mxu0 0
  %164 = vmatmul.mubr.bf16.gmra.mrb[0].mxu0 %v49
  %v165 = vpop.f32.mrb[0].mxu0
  %v166 = vadd.f32 %v38, %v165
  %v167 = vpop.f32.mrb[0].mxu0
  %v168 = vadd.f32 %v42, %v167
  %v169 = vpop.f32.mrb[0].mxu0
  %v170 = vadd.f32 %v38, %v169
  %v171 = vpop.f32.mrb[0].mxu0
  %v172 = vadd.f32 %v42, %v171
  %173 = vdwg.mxu0
  %v174 = vmax.f32 %v166, 0.0
  %v175 = vmax.f32 %v168, 0.0
  %v176 = vmax.f32 %v170, 0.0
  %v177 = vmax.f32 %v172, 0.0
  %178 = vst [vmem:[%s3] sm:$0xff] %v174
  %179 = vst [vmem:[%s3 + $0x8] sm:$0xff] %v175
  %180 = vst [vmem:[%s3 + $0x10] sm:$0xff] %v176
  %181 = vst [vmem:[%s3 + $0x18] sm:$0xff] %v177
  // Predicated region
  $region14: #{_lambda_.2} parent=0 // pred_check
    _
  $region15: #{_lambda_.2} parent=0 // pred_check_branch
    %183 = sbr.rel (0) target = $region17
  $region16: #{_lambda_.2} parent=0 // pred_region
    _
  $region17: #{_lambda_.2} parent=0 // pred_fallthru
    _
  // Predicated region
  $region18: #{_lambda_.2} parent=0 // pred_check
    _
  $region19: #{_lambda_.2} parent=0 // pred_check_branch
    %185 = sbr.rel (0) target = $region21
  $region20: #{_lambda_.2} parent=0 // pred_region
    _
  $region21: #{_lambda_.2} parent=0 // pred_fallthru
    _

// kernel: _lambda_.3
$region0: #{_lambda_.3}
  #allocation0 [shape = 'u32[]', space=smem, size = 0x4, offset = 0x4, fixed_abs, tag = 'smem constant byte address 0x4 - core index']
  #allocation1 [shape = 'u32[144,128]{1,0:T(1,128)}', space=vmem, size = 0x12000, scoped, tag = 'internal scratch']
  %s0 = inlined_call_operand.vmem [shape: bf16[16,256], index: 0, kind: input, shape index: {}]
  %s1 = inlined_call_operand.vmem [shape: bf16[256,128], index: 1, kind: input, shape index: {}]
  %s2 = inlined_call_operand.vmem [shape: bf16[256,128], index: 2, kind: input, shape index: {}]
  %s3 = inlined_call_operand.vmem [shape: f32[16,128], index: 3, kind: output, shape index: {0}]
  %s4 = inlined_call_operand.vmem [shape: f32[16,128], index: 4, kind: output, shape index: {1}]
  %5 = xla_tuple %s3, %s4
  %s6 = sld [smem:[#allocation0]]
  $region38: #{_lambda_.3} parent=0
    _
  %s8 = ssub.s32 1, %s6
  %s9 = scalar_select 0, %s8, %s6
  // Predicated region
  $region2: #{_lambda_.3} parent=0 // pred_check
    _
  $region3: #{_lambda_.3} parent=0 // pred_check_branch
    %11 = sbr.rel (0) target = $region5
  $region4: #{_lambda_.3} parent=0 // pred_region
    _
  $region5: #{_lambda_.3} parent=0 // pred_fallthru
    _
  // Predicated region
  $region6: #{_lambda_.3} parent=0 // pred_check
    _
  $region7: #{_lambda_.3} parent=0 // pred_check_branch
    %13 = sbr.rel (0) target = $region9
  $region8: #{_lambda_.3} parent=0 // pred_region
    _
  $region9: #{_lambda_.3} parent=0 // pred_fallthru
    _
  // Predicated region
  $region10: #{_lambda_.3} parent=0 // pred_check
    _
  $region11: #{_lambda_.3} parent=0 // pred_check_branch
    %15 = sbr.rel (0) target = $region13
  $region12: #{_lambda_.3} parent=0 // pred_region
    _
  $region13: #{_lambda_.3} parent=0 // pred_fallthru
    _
  %v17 = vld [vmem:[%s0] sm:$0xff]
  %v18 = vld [vmem:[%s0 + $0x8] sm:$0xff]
  %v19 = vld [vmem:[%s1] sm:$0xf]
  %v20 = vld [vmem:[%s1 + $0x4] sm:$0xf]
  %v21 = vld [vmem:[%s1 + $0x8] sm:$0xf]
  %v22 = vld [vmem:[%s1 + $0xc] sm:$0xf]
  %v23 = vld [vmem:[%s1 + $0x10] sm:$0xf]
  %v24 = vld [vmem:[%s1 + $0x14] sm:$0xf]
  %v25 = vld [vmem:[%s1 + $0x18] sm:$0xf]
  %v26 = vld [vmem:[%s1 + $0x1c] sm:$0xf]
  %v27 = vld [vmem:[%s1 + $0x20] sm:$0xf]
  %v28 = vld [vmem:[%s1 + $0x24] sm:$0xf]
  %v29 = vld [vmem:[%s1 + $0x28] sm:$0xf]
  %v30 = vld [vmem:[%s1 + $0x2c] sm:$0xf]
  %v31 = vld [vmem:[%s1 + $0x30] sm:$0xf]
  %v32 = vld [vmem:[%s1 + $0x34] sm:$0xf]
  %v33 = vld [vmem:[%s1 + $0x38] sm:$0xf]
  %v34 = vld [vmem:[%s1 + $0x3c] sm:$0xf]
  %v35 = vld [vmem:[%s1 + $0x40] sm:$0xf]
  %v36 = vld [vmem:[%s1 + $0x44] sm:$0xf]
  %v37 = vld [vmem:[%s1 + $0x48] sm:$0xf]
  %v38 = vld [vmem:[%s1 + $0x4c] sm:$0xf]
  %v39 = vld [vmem:[%s1 + $0x50] sm:$0xf]
  %v40 = vld [vmem:[%s1 + $0x54] sm:$0xf]
  %v41 = vld [vmem:[%s1 + $0x58] sm:$0xf]
  %v42 = vld [vmem:[%s1 + $0x5c] sm:$0xf]
  %v43 = vld [vmem:[%s1 + $0x60] sm:$0xf]
  %v44 = vld [vmem:[%s1 + $0x64] sm:$0xf]
  %v45 = vld [vmem:[%s1 + $0x68] sm:$0xf]
  %v46 = vld [vmem:[%s1 + $0x6c] sm:$0xf]
  %v47 = vld [vmem:[%s1 + $0x70] sm:$0xf]
  %v48 = vld [vmem:[%s1 + $0x74] sm:$0xf]
  %v49 = vld [vmem:[%s1 + $0x78] sm:$0xf]
  %v50 = vld [vmem:[%s1 + $0x7c] sm:$0xf]
  %v53 = vunpack.c.l.b16 %v17
  %v54 = vunpack.c.h.b16 %v17
  %v55 = vunpack.c.l.b16 %v18
  %v56 = vunpack.c.h.b16 %v18
  %v57 = vpack.c.b16 %v55, %v53
  %v58 = vpack.c.b16 %v56, %v54
  %v93 = vunpack.c.l.b16 %v19
  %v94 = vunpack.c.l.b16 %v20
  %v95 = vunpack.c.l.b16 %v21
  %v96 = vunpack.c.l.b16 %v22
  %v97 = vunpack.c.l.b16 %v23
  %v98 = vunpack.c.l.b16 %v24
  %v99 = vunpack.c.l.b16 %v25
  %v100 = vunpack.c.l.b16 %v26
  %v101 = vunpack.c.l.b16 %v27
  %v102 = vunpack.c.l.b16 %v28
  %v103 = vunpack.c.l.b16 %v29
  %v104 = vunpack.c.l.b16 %v30
  %v105 = vunpack.c.l.b16 %v31
  %v106 = vunpack.c.l.b16 %v32
  %v107 = vunpack.c.l.b16 %v33
  %v108 = vunpack.c.l.b16 %v34
  %v109 = vunpack.c.l.b16 %v35
  %v110 = vunpack.c.l.b16 %v36
  %v111 = vunpack.c.l.b16 %v37
  %v112 = vunpack.c.l.b16 %v38
  %v113 = vunpack.c.l.b16 %v39
  %v114 = vunpack.c.l.b16 %v40
  %v115 = vunpack.c.l.b16 %v41
  %v116 = vunpack.c.l.b16 %v42
  %v117 = vunpack.c.l.b16 %v43
  %v118 = vunpack.c.l.b16 %v44
  %v119 = vunpack.c.l.b16 %v45
  %v120 = vunpack.c.l.b16 %v46
  %v121 = vunpack.c.l.b16 %v47
  %v122 = vunpack.c.l.b16 %v48
  %v123 = vunpack.c.l.b16 %v49
  %v124 = vunpack.c.l.b16 %v50
  %v125 = vpack.c.b16 %v94, %v93
  %v126 = vpack.c.b16 %v96, %v95
  %v127 = vpack.c.b16 %v98, %v97
  %v128 = vpack.c.b16 %v100, %v99
  %v129 = vpack.c.b16 %v102, %v101
  %v130 = vpack.c.b16 %v104, %v103
  %v131 = vpack.c.b16 %v106, %v105
  %v132 = vpack.c.b16 %v108, %v107
  %v133 = vpack.c.b16 %v110, %v109
  %v134 = vpack.c.b16 %v112, %v111
  %v135 = vpack.c.b16 %v114, %v113
  %v136 = vpack.c.b16 %v116, %v115
  %v137 = vpack.c.b16 %v118, %v117
  %v138 = vpack.c.b16 %v120, %v119
  %v139 = vpack.c.b16 %v122, %v121
  %v140 = vpack.c.b16 %v124, %v123
  %157 = vmatprep.subr.bf16.mxu0 0
  %158 = vmatpush1.bf16.msra.mxu0 %v125
  %159 = vmatprep.subr.bf16.mxu0 0
  %160 = vmatpush1.bf16.msra.mxu0 %v126
  %161 = vmatprep.subr.bf16.mxu0 0
  %162 = vmatpush1.bf16.msra.mxu0 %v127
  %163 = vmatprep.subr.bf16.mxu0 0
  %164 = vmatpush1.bf16.msra.mxu0 %v128
  %165 = vmatprep.subr.bf16.mxu0 0
  %166 = vmatpush1.bf16.msra.mxu0 %v129
  %167 = vmatprep.subr.bf16.mxu0 0
  %168 = vmatpush1.bf16.msra.mxu0 %v130
  %169 = vmatprep.subr.bf16.mxu0 0
  %170 = vmatpush1.bf16.msra.mxu0 %v131
  %171 = vmatprep.subr.bf16.mxu0 0
  %172 = vmatpush1.bf16.msra.mxu0 %v132
  %173 = vmatprep.subr.bf16.mxu0 0
  %174 = vmatpush1.bf16.msra.mxu0 %v133
  %175 = vmatprep.subr.bf16.mxu0 0
  %176 = vmatpush1.bf16.msra.mxu0 %v134
  %177 = vmatprep.subr.bf16.mxu0 0
  %178 = vmatpush1.bf16.msra.mxu0 %v135
  %179 = vmatprep.subr.bf16.mxu0 0
  %180 = vmatpush1.bf16.msra.mxu0 %v136
  %181 = vmatprep.subr.bf16.mxu0 0
  %182 = vmatpush1.bf16.msra.mxu0 %v137
  %183 = vmatprep.subr.bf16.mxu0 0
  %184 = vmatpush1.bf16.msra.mxu0 %v138
  %185 = vmatprep.subr.bf16.mxu0 0
  %186 = vmatpush1.bf16.msra.mxu0 %v139
  %187 = vmatprep.subr.bf16.mxu0 0
  %188 = vmatpush1.bf16.msra.mxu0 %v140
  %189 = vmatprep.mubr.bf16.mxu0 %v58
  %190 = vmatmul.mubr.bf16.gmra.mrb[0].mxu0 %v57
  %v191 = vpop.f32.mrb[0].mxu0
  %v192 = vadd.f32 0.0, %v191
  %v193 = vpop.f32.mrb[0].mxu0
  %v194 = vpop.f32.mrb[0].mxu0
  %v195 = vadd.f32 0.0, %v194
  %v196 = vpop.f32.mrb[0].mxu0
  %197 = vdwg.mxu0
  %v198 = vld [vmem:[%s2] sm:$0xf]
  %v199 = vld [vmem:[%s2 + $0x4] sm:$0xf]
  %v200 = vld [vmem:[%s2 + $0x8] sm:$0xf]
  %v201 = vld [vmem:[%s2 + $0xc] sm:$0xf]
  %v202 = vld [vmem:[%s2 + $0x10] sm:$0xf]
  %v203 = vld [vmem:[%s2 + $0x14] sm:$0xf]
  %v204 = vld [vmem:[%s2 + $0x18] sm:$0xf]
  %v205 = vld [vmem:[%s2 + $0x1c] sm:$0xf]
  %v206 = vld [vmem:[%s2 + $0x20] sm:$0xf]
  %v207 = vld [vmem:[%s2 + $0x24] sm:$0xf]
  %v208 = vld [vmem:[%s2 + $0x28] sm:$0xf]
  %v209 = vld [vmem:[%s2 + $0x2c] sm:$0xf]
  %v210 = vld [vmem:[%s2 + $0x30] sm:$0xf]
  %v211 = vld [vmem:[%s2 + $0x34] sm:$0xf]
  %v212 = vld [vmem:[%s2 + $0x38] sm:$0xf]
  %v213 = vld [vmem:[%s2 + $0x3c] sm:$0xf]
  %v214 = vld [vmem:[%s2 + $0x40] sm:$0xf]
  %v215 = vld [vmem:[%s2 + $0x44] sm:$0xf]
  %v216 = vld [vmem:[%s2 + $0x48] sm:$0xf]
  %v217 = vld [vmem:[%s2 + $0x4c] sm:$0xf]
  %v218 = vld [vmem:[%s2 + $0x50] sm:$0xf]
  %v219 = vld [vmem:[%s2 + $0x54] sm:$0xf]
  %v220 = vld [vmem:[%s2 + $0x58] sm:$0xf]
  %v221 = vld [vmem:[%s2 + $0x5c] sm:$0xf]
  %v222 = vld [vmem:[%s2 + $0x60] sm:$0xf]
  %v223 = vld [vmem:[%s2 + $0x64] sm:$0xf]
  %v224 = vld [vmem:[%s2 + $0x68] sm:$0xf]
  %v225 = vld [vmem:[%s2 + $0x6c] sm:$0xf]
  %v226 = vld [vmem:[%s2 + $0x70] sm:$0xf]
  %v227 = vld [vmem:[%s2 + $0x74] sm:$0xf]
  %v228 = vld [vmem:[%s2 + $0x78] sm:$0xf]
  %v229 = vld [vmem:[%s2 + $0x7c] sm:$0xf]
  %v262 = vunpack.c.l.b16 %v198
  %v263 = vunpack.c.l.b16 %v199
  %v264 = vunpack.c.l.b16 %v200
  %v265 = vunpack.c.l.b16 %v201
  %v266 = vunpack.c.l.b16 %v202
  %v267 = vunpack.c.l.b16 %v203
  %v268 = vunpack.c.l.b16 %v204
  %v269 = vunpack.c.l.b16 %v205
  %v270 = vunpack.c.l.b16 %v206
  %v271 = vunpack.c.l.b16 %v207
  %v272 = vunpack.c.l.b16 %v208
  %v273 = vunpack.c.l.b16 %v209
  %v274 = vunpack.c.l.b16 %v210
  %v275 = vunpack.c.l.b16 %v211
  %v276 = vunpack.c.l.b16 %v212
  %v277 = vunpack.c.l.b16 %v213
  %v278 = vunpack.c.l.b16 %v214
  %v279 = vunpack.c.l.b16 %v215
  %v280 = vunpack.c.l.b16 %v216
  %v281 = vunpack.c.l.b16 %v217
  %v282 = vunpack.c.l.b16 %v218
  %v283 = vunpack.c.l.b16 %v219
  %v284 = vunpack.c.l.b16 %v220
  %v285 = vunpack.c.l.b16 %v221
  %v286 = vunpack.c.l.b16 %v222
  %v287 = vunpack.c.l.b16 %v223
  %v288 = vunpack.c.l.b16 %v224
  %v289 = vunpack.c.l.b16 %v225
  %v290 = vunpack.c.l.b16 %v226
  %v291 = vunpack.c.l.b16 %v227
  %v292 = vunpack.c.l.b16 %v228
  %v293 = vunpack.c.l.b16 %v229
  %v294 = vpack.c.b16 %v263, %v262
  %v295 = vpack.c.b16 %v265, %v264
  %v296 = vpack.c.b16 %v267, %v266
  %v297 = vpack.c.b16 %v269, %v268
  %v298 = vpack.c.b16 %v271, %v270
  %v299 = vpack.c.b16 %v273, %v272
  %v300 = vpack.c.b16 %v275, %v274
  %v301 = vpack.c.b16 %v277, %v276
  %v302 = vpack.c.b16 %v279, %v278
  %v303 = vpack.c.b16 %v281, %v280
  %v304 = vpack.c.b16 %v283, %v282
  %v305 = vpack.c.b16 %v285, %v284
  %v306 = vpack.c.b16 %v287, %v286
  %v307 = vpack.c.b16 %v289, %v288
  %v308 = vpack.c.b16 %v291, %v290
  %v309 = vpack.c.b16 %v293, %v292
  %326 = vmatprep.subr.bf16.mxu0 0
  %327 = vmatpush1.bf16.msra.mxu0 %v294
  %328 = vmatprep.subr.bf16.mxu0 0
  %329 = vmatpush1.bf16.msra.mxu0 %v295
  %330 = vmatprep.subr.bf16.mxu0 0
  %331 = vmatpush1.bf16.msra.mxu0 %v296
  %332 = vmatprep.subr.bf16.mxu0 0
  %333 = vmatpush1.bf16.msra.mxu0 %v297
  %334 = vmatprep.subr.bf16.mxu0 0
  %335 = vmatpush1.bf16.msra.mxu0 %v298
  %336 = vmatprep.subr.bf16.mxu0 0
  %337 = vmatpush1.bf16.msra.mxu0 %v299
  %338 = vmatprep.subr.bf16.mxu0 0
  %339 = vmatpush1.bf16.msra.mxu0 %v300
  %340 = vmatprep.subr.bf16.mxu0 0
  %341 = vmatpush1.bf16.msra.mxu0 %v301
  %342 = vmatprep.subr.bf16.mxu0 0
  %343 = vmatpush1.bf16.msra.mxu0 %v302
  %344 = vmatprep.subr.bf16.mxu0 0
  %345 = vmatpush1.bf16.msra.mxu0 %v303
  %346 = vmatprep.subr.bf16.mxu0 0
  %347 = vmatpush1.bf16.msra.mxu0 %v304
  %348 = vmatprep.subr.bf16.mxu0 0
  %349 = vmatpush1.bf16.msra.mxu0 %v305
  %350 = vmatprep.subr.bf16.mxu0 0
  %351 = vmatpush1.bf16.msra.mxu0 %v306
  %352 = vmatprep.subr.bf16.mxu0 0
  %353 = vmatpush1.bf16.msra.mxu0 %v307
  %354 = vmatprep.subr.bf16.mxu0 0
  %355 = vmatpush1.bf16.msra.mxu0 %v308
  %356 = vmatprep.subr.bf16.mxu0 0
  %357 = vmatpush1.bf16.msra.mxu0 %v309
  %358 = vmatprep.mubr.bf16.mxu0 %v58
  %359 = vmatmul.mubr.bf16.gmra.mrb[0].mxu0 %v57
  %v360 = vpop.f32.mrb[0].mxu0
  %v361 = vadd.f32 0.0, %v360
  %v362 = vpop.f32.mrb[0].mxu0
  %v363 = vpop.f32.mrb[0].mxu0
  %v364 = vadd.f32 0.0, %v363
  %v365 = vpop.f32.mrb[0].mxu0
  %366 = vdwg.mxu0
  %p367 = scmp.eq.s32.totalorder 0, 0
  // Predicated region
  $region14: #{_lambda_.3} parent=0 // pred_check
    %p368 = pneg %p367
  $region15: #{_lambda_.3} parent=0 // pred_check_branch
    %370 = sbr.rel (%p368) target = $region17
  $region16: #{_lambda_.3} parent=0 // pred_region
    %371 = vst [vmem:[%s3] sm:$0xff] %v192
    %372 = vst [vmem:[%s3 + $0x8] sm:$0xff] %v195
    %373 = vst [vmem:[%s4] sm:$0xff] %v361
    %374 = vst [vmem:[%s4 + $0x8] sm:$0xff] %v364
  $region17: #{_lambda_.3} parent=0 // pred_fallthru
    _
  %p375 = scmp.gt.s32.totalorder 0, 0
  // Predicated region
  $region18: #{_lambda_.3} parent=0 // pred_check
    %p376 = pneg %p375
  $region19: #{_lambda_.3} parent=0 // pred_check_branch
    %378 = sbr.rel (%p376) target = $region21
  $region20: #{_lambda_.3} parent=0 // pred_region
    %v379 = vld [vmem:[%s3] sm:$0xff]
    %v380 = vld [vmem:[%s3 + $0x8] sm:$0xff]
    %v381 = vadd.f32 %v379, %v192
    %v382 = vadd.f32 %v380, %v195
    %383 = vst [vmem:[%s3] sm:$0xff] %v381
    %384 = vst [vmem:[%s3 + $0x8] sm:$0xff] %v382
    %v385 = vld [vmem:[%s4] sm:$0xff]
    %v386 = vld [vmem:[%s4 + $0x8] sm:$0xff]
    %v387 = vadd.f32 %v385, %v361
    %v388 = vadd.f32 %v386, %v364
    %389 = vst [vmem:[%s4] sm:$0xff] %v387
    %390 = vst [vmem:[%s4 + $0x8] sm:$0xff] %v388
  $region21: #{_lambda_.3} parent=0 // pred_fallthru
    _
  // Predicated region
  $region22: #{_lambda_.3} parent=0 // pred_check
    _
  $region23: #{_lambda_.3} parent=0 // pred_check_branch
    %392 = sbr.rel (0) target = $region25
  $region24: #{_lambda_.3} parent=0 // pred_region
    _
  $region25: #{_lambda_.3} parent=0 // pred_fallthru
    _
  // Predicated region
  $region26: #{_lambda_.3} parent=0 // pred_check
    _
  $region27: #{_lambda_.3} parent=0 // pred_check_branch
    %394 = sbr.rel (0) target = $region29
  $region28: #{_lambda_.3} parent=0 // pred_region
    _
  $region29: #{_lambda_.3} parent=0 // pred_fallthru
    _
  // Predicated region
  $region30: #{_lambda_.3} parent=0 // pred_check
    _
  $region31: #{_lambda_.3} parent=0 // pred_check_branch
    %396 = sbr.rel (0) target = $region33
  $region32: #{_lambda_.3} parent=0 // pred_region
    _
  $region33: #{_lambda_.3} parent=0 // pred_fallthru
    _
  // Predicated region
  $region34: #{_lambda_.3} parent=0 // pred_check
    _
  $region35: #{_lambda_.3} parent=0 // pred_check_branch
    %398 = sbr.rel (0) target = $region37
  $region36: #{_lambda_.3} parent=0 // pred_region
    _
  $region37: #{_lambda_.3} parent=0 // pred_fallthru
    _

// kernel: branch_1_fun.1
$region0: #{branch_1_fun.1}
  #allocation0 [shape = 'u32[]', space=smem, size = 0x4, offset = 0x4, fixed_abs, tag = 'smem constant byte address 0x4 - core index']
  #allocation1 [shape = 'u32[144,128]{1,0:T(1,128)}', space=vmem, size = 0x12000, scoped, tag = 'internal scratch']
  %s0 = inlined_call_operand.vmem [shape: bf16[16,256], index: 0, kind: input, shape index: {}]
  %s1 = inlined_call_operand.vmem [shape: bf16[256,128], index: 1, kind: input, shape index: {}]
  %s2 = inlined_call_operand.vmem [shape: bf16[256,128], index: 2, kind: input, shape index: {}]
  %s3 = inlined_call_operand.hbm [shape: f32[16,128], index: 3, kind: output, shape index: {0}]
  %s4 = inlined_call_operand.hbm [shape: f32[16,128], index: 4, kind: output, shape index: {1}]
  %5 = xla_tuple %s3, %s4
  %s6 = sld [smem:[#allocation0]]
  $region38: #{branch_1_fun.1} parent=0
    _
  %s8 = ssub.s32 1, %s6
  %s9 = scalar_select 0, %s8, %s6
  $region1: #{branch_1_fun.1} parent=0
    #allocation2 [shape = 'u8[8192]{0}', space=vmem, size = 0x2000, scoped, tag = 'output window, operand 0, single buffered']
    #allocation3 [shape = 's32[1]{0}', space=sflag, size = 0x4, scoped, tag = 'scoped memory for branch_1_fun.1']
    #allocation4 [shape = 'u8[8192]{0}', space=vmem, size = 0x2000, scoped, tag = 'output window, operand 1, single buffered']
    #allocation5 [shape = 's32[1]{0}', space=sflag, size = 0x4, scoped, tag = 'scoped memory for branch_1_fun.1']
    %10 = vsyncpa [#allocation3], 0
    %11 = vsyncpa [#allocation5], 0
    // Predicated region
    $region2: #{branch_1_fun.1} parent=1 // pred_check
      _
    $region3: #{branch_1_fun.1} parent=1 // pred_check_branch
      %13 = sbr.rel (0) target = $region5
    $region4: #{branch_1_fun.1} parent=1 // pred_region
      _
    $region5: #{branch_1_fun.1} parent=1 // pred_fallthru
      _
    // Predicated region
    $region6: #{branch_1_fun.1} parent=1 // pred_check
      _
    $region7: #{branch_1_fun.1} parent=1 // pred_check_branch
      %15 = sbr.rel (0) target = $region9
    $region8: #{branch_1_fun.1} parent=1 // pred_region
      _
    $region9: #{branch_1_fun.1} parent=1 // pred_fallthru
      _
    // Predicated region
    $region10: #{branch_1_fun.1} parent=1 // pred_check
      _
    $region11: #{branch_1_fun.1} parent=1 // pred_check_branch
      %17 = sbr.rel (0) target = $region13
    $region12: #{branch_1_fun.1} parent=1 // pred_region
      _
    $region13: #{branch_1_fun.1} parent=1 // pred_fallthru
      _
    %v19 = vld [vmem:[%s0] sm:$0xff]
    %v20 = vld [vmem:[%s0 + $0x8] sm:$0xff]
    %v21 = vld [vmem:[%s1] sm:$0xf]
    %v22 = vld [vmem:[%s1 + $0x4] sm:$0xf]
    %v23 = vld [vmem:[%s1 + $0x8] sm:$0xf]
    %v24 = vld [vmem:[%s1 + $0xc] sm:$0xf]
    %v25 = vld [vmem:[%s1 + $0x10] sm:$0xf]
    %v26 = vld [vmem:[%s1 + $0x14] sm:$0xf]
    %v27 = vld [vmem:[%s1 + $0x18] sm:$0xf]
    %v28 = vld [vmem:[%s1 + $0x1c] sm:$0xf]
    %v29 = vld [vmem:[%s1 + $0x20] sm:$0xf]
    %v30 = vld [vmem:[%s1 + $0x24] sm:$0xf]
    %v31 = vld [vmem:[%s1 + $0x28] sm:$0xf]
    %v32 = vld [vmem:[%s1 + $0x2c] sm:$0xf]
    %v33 = vld [vmem:[%s1 + $0x30] sm:$0xf]
    %v34 = vld [vmem:[%s1 + $0x34] sm:$0xf]
    %v35 = vld [vmem:[%s1 + $0x38] sm:$0xf]
    %v36 = vld [vmem:[%s1 + $0x3c] sm:$0xf]
    %v37 = vld [vmem:[%s1 + $0x40] sm:$0xf]
    %v38 = vld [vmem:[%s1 + $0x44] sm:$0xf]
    %v39 = vld [vmem:[%s1 + $0x48] sm:$0xf]
    %v40 = vld [vmem:[%s1 + $0x4c] sm:$0xf]
    %v41 = vld [vmem:[%s1 + $0x50] sm:$0xf]
    %v42 = vld [vmem:[%s1 + $0x54] sm:$0xf]
    %v43 = vld [vmem:[%s1 + $0x58] sm:$0xf]
    %v44 = vld [vmem:[%s1 + $0x5c] sm:$0xf]
    %v45 = vld [vmem:[%s1 + $0x60] sm:$0xf]
    %v46 = vld [vmem:[%s1 + $0x64] sm:$0xf]
    %v47 = vld [vmem:[%s1 + $0x68] sm:$0xf]
    %v48 = vld [vmem:[%s1 + $0x6c] sm:$0xf]
    %v49 = vld [vmem:[%s1 + $0x70] sm:$0xf]
    %v50 = vld [vmem:[%s1 + $0x74] sm:$0xf]
    %v51 = vld [vmem:[%s1 + $0x78] sm:$0xf]
    %v52 = vld [vmem:[%s1 + $0x7c] sm:$0xf]
    %v55 = vunpack.c.l.b16 %v19
    %v56 = vunpack.c.h.b16 %v19
    %v57 = vunpack.c.l.b16 %v20
    %v58 = vunpack.c.h.b16 %v20
    %v59 = vpack.c.b16 %v57, %v55
    %v60 = vpack.c.b16 %v58, %v56
    %v95 = vunpack.c.l.b16 %v21
    %v96 = vunpack.c.l.b16 %v22
    %v97 = vunpack.c.l.b16 %v23
    %v98 = vunpack.c.l.b16 %v24
    %v99 = vunpack.c.l.b16 %v25
    %v100 = vunpack.c.l.b16 %v26
    %v101 = vunpack.c.l.b16 %v27
    %v102 = vunpack.c.l.b16 %v28
    %v103 = vunpack.c.l.b16 %v29
    %v104 = vunpack.c.l.b16 %v30
    %v105 = vunpack.c.l.b16 %v31
    %v106 = vunpack.c.l.b16 %v32
    %v107 = vunpack.c.l.b16 %v33
    %v108 = vunpack.c.l.b16 %v34
    %v109 = vunpack.c.l.b16 %v35
    %v110 = vunpack.c.l.b16 %v36
    %v111 = vunpack.c.l.b16 %v37
    %v112 = vunpack.c.l.b16 %v38
    %v113 = vunpack.c.l.b16 %v39
    %v114 = vunpack.c.l.b16 %v40
    %v115 = vunpack.c.l.b16 %v41
    %v116 = vunpack.c.l.b16 %v42
    %v117 = vunpack.c.l.b16 %v43
    %v118 = vunpack.c.l.b16 %v44
    %v119 = vunpack.c.l.b16 %v45
    %v120 = vunpack.c.l.b16 %v46
    %v121 = vunpack.c.l.b16 %v47
    %v122 = vunpack.c.l.b16 %v48
    %v123 = vunpack.c.l.b16 %v49
    %v124 = vunpack.c.l.b16 %v50
    %v125 = vunpack.c.l.b16 %v51
    %v126 = vunpack.c.l.b16 %v52
    %v127 = vpack.c.b16 %v96, %v95
    %v128 = vpack.c.b16 %v98, %v97
    %v129 = vpack.c.b16 %v100, %v99
    %v130 = vpack.c.b16 %v102, %v101
    %v131 = vpack.c.b16 %v104, %v103
    %v132 = vpack.c.b16 %v106, %v105
    %v133 = vpack.c.b16 %v108, %v107
    %v134 = vpack.c.b16 %v110, %v109
    %v135 = vpack.c.b16 %v112, %v111
    %v136 = vpack.c.b16 %v114, %v113
    %v137 = vpack.c.b16 %v116, %v115
    %v138 = vpack.c.b16 %v118, %v117
    %v139 = vpack.c.b16 %v120, %v119
    %v140 = vpack.c.b16 %v122, %v121
    %v141 = vpack.c.b16 %v124, %v123
    %v142 = vpack.c.b16 %v126, %v125
    %159 = vmatprep.subr.bf16.mxu0 0
    %160 = vmatpush1.bf16.msra.mxu0 %v127
    %161 = vmatprep.subr.bf16.mxu0 0
    %162 = vmatpush1.bf16.msra.mxu0 %v128
    %163 = vmatprep.subr.bf16.mxu0 0
    %164 = vmatpush1.bf16.msra.mxu0 %v129
    %165 = vmatprep.subr.bf16.mxu0 0
    %166 = vmatpush1.bf16.msra.mxu0 %v130
    %167 = vmatprep.subr.bf16.mxu0 0
    %168 = vmatpush1.bf16.msra.mxu0 %v131
    %169 = vmatprep.subr.bf16.mxu0 0
    %170 = vmatpush1.bf16.msra.mxu0 %v132
    %171 = vmatprep.subr.bf16.mxu0 0
    %172 = vmatpush1.bf16.msra.mxu0 %v133
    %173 = vmatprep.subr.bf16.mxu0 0
    %174 = vmatpush1.bf16.msra.mxu0 %v134
    %175 = vmatprep.subr.bf16.mxu0 0
    %176 = vmatpush1.bf16.msra.mxu0 %v135
    %177 = vmatprep.subr.bf16.mxu0 0
    %178 = vmatpush1.bf16.msra.mxu0 %v136
    %179 = vmatprep.subr.bf16.mxu0 0
    %180 = vmatpush1.bf16.msra.mxu0 %v137
    %181 = vmatprep.subr.bf16.mxu0 0
    %182 = vmatpush1.bf16.msra.mxu0 %v138
    %183 = vmatprep.subr.bf16.mxu0 0
    %184 = vmatpush1.bf16.msra.mxu0 %v139
    %185 = vmatprep.subr.bf16.mxu0 0
    %186 = vmatpush1.bf16.msra.mxu0 %v140
    %187 = vmatprep.subr.bf16.mxu0 0
    %188 = vmatpush1.bf16.msra.mxu0 %v141
    %189 = vmatprep.subr.bf16.mxu0 0
    %190 = vmatpush1.bf16.msra.mxu0 %v142
    %191 = vmatprep.mubr.bf16.mxu0 %v60
    %192 = vmatmul.mubr.bf16.gmra.mrb[0].mxu0 %v59
    %v193 = vpop.f32.mrb[0].mxu0
    %v194 = vadd.f32 0.0, %v193
    %v195 = vpop.f32.mrb[0].mxu0
    %v196 = vpop.f32.mrb[0].mxu0
    %v197 = vadd.f32 0.0, %v196
    %v198 = vpop.f32.mrb[0].mxu0
    %199 = vdwg.mxu0
    %v200 = vld [vmem:[%s2] sm:$0xf]
    %v201 = vld [vmem:[%s2 + $0x4] sm:$0xf]
    %v202 = vld [vmem:[%s2 + $0x8] sm:$0xf]
    %v203 = vld [vmem:[%s2 + $0xc] sm:$0xf]
    %v204 = vld [vmem:[%s2 + $0x10] sm:$0xf]
    %v205 = vld [vmem:[%s2 + $0x14] sm:$0xf]
    %v206 = vld [vmem:[%s2 + $0x18] sm:$0xf]
    %v207 = vld [vmem:[%s2 + $0x1c] sm:$0xf]
    %v208 = vld [vmem:[%s2 + $0x20] sm:$0xf]
    %v209 = vld [vmem:[%s2 + $0x24] sm:$0xf]
    %v210 = vld [vmem:[%s2 + $0x28] sm:$0xf]
    %v211 = vld [vmem:[%s2 + $0x2c] sm:$0xf]
    %v212 = vld [vmem:[%s2 + $0x30] sm:$0xf]
    %v213 = vld [vmem:[%s2 + $0x34] sm:$0xf]
    %v214 = vld [vmem:[%s2 + $0x38] sm:$0xf]
    %v215 = vld [vmem:[%s2 + $0x3c] sm:$0xf]
    %v216 = vld [vmem:[%s2 + $0x40] sm:$0xf]
    %v217 = vld [vmem:[%s2 + $0x44] sm:$0xf]
    %v218 = vld [vmem:[%s2 + $0x48] sm:$0xf]
    %v219 = vld [vmem:[%s2 + $0x4c] sm:$0xf]
    %v220 = vld [vmem:[%s2 + $0x50] sm:$0xf]
    %v221 = vld [vmem:[%s2 + $0x54] sm:$0xf]
    %v222 = vld [vmem:[%s2 + $0x58] sm:$0xf]
    %v223 = vld [vmem:[%s2 + $0x5c] sm:$0xf]
    %v224 = vld [vmem:[%s2 + $0x60] sm:$0xf]
    %v225 = vld [vmem:[%s2 + $0x64] sm:$0xf]
    %v226 = vld [vmem:[%s2 + $0x68] sm:$0xf]
    %v227 = vld [vmem:[%s2 + $0x6c] sm:$0xf]
    %v228 = vld [vmem:[%s2 + $0x70] sm:$0xf]
    %v229 = vld [vmem:[%s2 + $0x74] sm:$0xf]
    %v230 = vld [vmem:[%s2 + $0x78] sm:$0xf]
    %v231 = vld [vmem:[%s2 + $0x7c] sm:$0xf]
    %v264 = vunpack.c.l.b16 %v200
    %v265 = vunpack.c.l.b16 %v201
    %v266 = vunpack.c.l.b16 %v202
    %v267 = vunpack.c.l.b16 %v203
    %v268 = vunpack.c.l.b16 %v204
    %v269 = vunpack.c.l.b16 %v205
    %v270 = vunpack.c.l.b16 %v206
    %v271 = vunpack.c.l.b16 %v207
    %v272 = vunpack.c.l.b16 %v208
    %v273 = vunpack.c.l.b16 %v209
    %v274 = vunpack.c.l.b16 %v210
    %v275 = vunpack.c.l.b16 %v211
    %v276 = vunpack.c.l.b16 %v212
    %v277 = vunpack.c.l.b16 %v213
    %v278 = vunpack.c.l.b16 %v214
    %v279 = vunpack.c.l.b16 %v215
    %v280 = vunpack.c.l.b16 %v216
    %v281 = vunpack.c.l.b16 %v217
    %v282 = vunpack.c.l.b16 %v218
    %v283 = vunpack.c.l.b16 %v219
    %v284 = vunpack.c.l.b16 %v220
    %v285 = vunpack.c.l.b16 %v221
    %v286 = vunpack.c.l.b16 %v222
    %v287 = vunpack.c.l.b16 %v223
    %v288 = vunpack.c.l.b16 %v224
    %v289 = vunpack.c.l.b16 %v225
    %v290 = vunpack.c.l.b16 %v226
    %v291 = vunpack.c.l.b16 %v227
    %v292 = vunpack.c.l.b16 %v228
    %v293 = vunpack.c.l.b16 %v229
    %v294 = vunpack.c.l.b16 %v230
    %v295 = vunpack.c.l.b16 %v231
    %v296 = vpack.c.b16 %v265, %v264
    %v297 = vpack.c.b16 %v267, %v266
    %v298 = vpack.c.b16 %v269, %v268
    %v299 = vpack.c.b16 %v271, %v270
    %v300 = vpack.c.b16 %v273, %v272
    %v301 = vpack.c.b16 %v275, %v274
    %v302 = vpack.c.b16 %v277, %v276
    %v303 = vpack.c.b16 %v279, %v278
    %v304 = vpack.c.b16 %v281, %v280
    %v305 = vpack.c.b16 %v283, %v282
    %v306 = vpack.c.b16 %v285, %v284
    %v307 = vpack.c.b16 %v287, %v286
    %v308 = vpack.c.b16 %v289, %v288
    %v309 = vpack.c.b16 %v291, %v290
    %v310 = vpack.c.b16 %v293, %v292
    %v311 = vpack.c.b16 %v295, %v294
    %328 = vmatprep.subr.bf16.mxu0 0
    %329 = vmatpush1.bf16.msra.mxu0 %v296
    %330 = vmatprep.subr.bf16.mxu0 0
    %331 = vmatpush1.bf16.msra.mxu0 %v297
    %332 = vmatprep.subr.bf16.mxu0 0
    %333 = vmatpush1.bf16.msra.mxu0 %v298
    %334 = vmatprep.subr.bf16.mxu0 0
    %335 = vmatpush1.bf16.msra.mxu0 %v299
    %336 = vmatprep.subr.bf16.mxu0 0
    %337 = vmatpush1.bf16.msra.mxu0 %v300
    %338 = vmatprep.subr.bf16.mxu0 0
    %339 = vmatpush1.bf16.msra.mxu0 %v301
    %340 = vmatprep.subr.bf16.mxu0 0
    %341 = vmatpush1.bf16.msra.mxu0 %v302
    %342 = vmatprep.subr.bf16.mxu0 0
    %343 = vmatpush1.bf16.msra.mxu0 %v303
    %344 = vmatprep.subr.bf16.mxu0 0
    %345 = vmatpush1.bf16.msra.mxu0 %v304
    %346 = vmatprep.subr.bf16.mxu0 0
    %347 = vmatpush1.bf16.msra.mxu0 %v305
    %348 = vmatprep.subr.bf16.mxu0 0
    %349 = vmatpush1.bf16.msra.mxu0 %v306
    %350 = vmatprep.subr.bf16.mxu0 0
    %351 = vmatpush1.bf16.msra.mxu0 %v307
    %352 = vmatprep.subr.bf16.mxu0 0
    %353 = vmatpush1.bf16.msra.mxu0 %v308
    %354 = vmatprep.subr.bf16.mxu0 0
    %355 = vmatpush1.bf16.msra.mxu0 %v309
    %356 = vmatprep.subr.bf16.mxu0 0
    %357 = vmatpush1.bf16.msra.mxu0 %v310
    %358 = vmatprep.subr.bf16.mxu0 0
    %359 = vmatpush1.bf16.msra.mxu0 %v311
    %360 = vmatprep.mubr.bf16.mxu0 %v60
    %361 = vmatmul.mubr.bf16.gmra.mrb[0].mxu0 %v59
    %v362 = vpop.f32.mrb[0].mxu0
    %v363 = vadd.f32 0.0, %v362
    %v364 = vpop.f32.mrb[0].mxu0
    %v365 = vpop.f32.mrb[0].mxu0
    %v366 = vadd.f32 0.0, %v365
    %v367 = vpop.f32.mrb[0].mxu0
    %368 = vdwg.mxu0
    %p369 = scmp.eq.s32.totalorder 0, 0
    // Predicated region
    $region14: #{branch_1_fun.1} parent=1 // pred_check
      %p370 = pneg %p369
    $region15: #{branch_1_fun.1} parent=1 // pred_check_branch
      %372 = sbr.rel (%p370) target = $region17
    $region16: #{branch_1_fun.1} parent=1 // pred_region
      %373 = vst [vmem:[#allocation2] sm:$0xff] %v194
      %374 = vst [vmem:[#allocation2 + $0x8] sm:$0xff] %v197
      %375 = vst [vmem:[#allocation4] sm:$0xff] %v363
      %376 = vst [vmem:[#allocation4 + $0x8] sm:$0xff] %v366
    $region17: #{branch_1_fun.1} parent=1 // pred_fallthru
      _
    %p377 = scmp.gt.s32.totalorder 0, 0
    // Predicated region
    $region18: #{branch_1_fun.1} parent=1 // pred_check
      %p378 = pneg %p377
    $region19: #{branch_1_fun.1} parent=1 // pred_check_branch
      %380 = sbr.rel (%p378) target = $region21
    $region20: #{branch_1_fun.1} parent=1 // pred_region
      %v381 = vld [vmem:[#allocation2] sm:$0xff]
      %v382 = vld [vmem:[#allocation2 + $0x8] sm:$0xff]
      %v383 = vadd.f32 %v381, %v194
      %v384 = vadd.f32 %v382, %v197
      %385 = vst [vmem:[#allocation2] sm:$0xff] %v383
      %386 = vst [vmem:[#allocation2 + $0x8] sm:$0xff] %v384
      %v387 = vld [vmem:[#allocation4] sm:$0xff]
      %v388 = vld [vmem:[#allocation4 + $0x8] sm:$0xff]
      %v389 = vadd.f32 %v387, %v363
      %v390 = vadd.f32 %v388, %v366
      %391 = vst [vmem:[#allocation4] sm:$0xff] %v389
      %392 = vst [vmem:[#allocation4 + $0x8] sm:$0xff] %v390
    $region21: #{branch_1_fun.1} parent=1 // pred_fallthru
      _
    // Predicated region
    $region22: #{branch_1_fun.1} parent=1 // pred_check
      _
    $region23: #{branch_1_fun.1} parent=1 // pred_check_branch
      %394 = sbr.rel (0) target = $region25
    $region24: #{branch_1_fun.1} parent=1 // pred_region
      %s396 = ssub.s32 256, 256
      %397 = vsyncadd [#allocation3], %s396
      %s398 = sshll.u32 [#allocation2], 4
      %s399 = int_to_ptr.vmem [resolvable:$true] %s398
      %404 = dma.vmem_to_hbm [thread:$0]  %s399, 256, %s3, [#allocation3], 128, 128, 8
    $region25: #{branch_1_fun.1} parent=1 // pred_fallthru
      _
    // Predicated region
    $region26: #{branch_1_fun.1} parent=1 // pred_check
      _
    $region27: #{branch_1_fun.1} parent=1 // pred_check_branch
      %406 = sbr.rel (0) target = $region29
    $region28: #{branch_1_fun.1} parent=1 // pred_region
      %s408 = ssub.s32 256, 256
      %409 = vsyncadd [#allocation5], %s408
      %s410 = sshll.u32 [#allocation4], 4
      %s411 = int_to_ptr.vmem [resolvable:$true] %s410
      %416 = dma.vmem_to_hbm [thread:$0]  %s411, 256, %s4, [#allocation5], 128, 128, 8
    $region29: #{branch_1_fun.1} parent=1 // pred_fallthru
      _
    // Predicated region
    $region30: #{branch_1_fun.1} parent=1 // pred_check
      _
    $region31: #{branch_1_fun.1} parent=1 // pred_check_branch
      %418 = sbr.rel (0) target = $region33
    $region32: #{branch_1_fun.1} parent=1 // pred_region
      %419 = dma.done [#allocation3], 256
    $region33: #{branch_1_fun.1} parent=1 // pred_fallthru
      _
    // Predicated region
    $region34: #{branch_1_fun.1} parent=1 // pred_check
      _
    $region35: #{branch_1_fun.1} parent=1 // pred_check_branch
      %421 = sbr.rel (0) target = $region37
    $region36: #{branch_1_fun.1} parent=1 // pred_region
      %422 = dma.done [#allocation5], 256
    $region37: #{branch_1_fun.1} parent=1 // pred_fallthru
      _
    %423 = vsyncpa [#allocation3], 1
    %424 = vsyncpa [#allocation5], 1

</llo_original>
